<compile_context>
chip_gen: v5e
topology: v5e:2x2
jax: 0.10.0
libtpu: 0.0.40
codegen_flags: <defaults>
</compile_context>

<pallas_src>
import functools

import jax
import jax.numpy as jnp
from jax.experimental import pallas as pl
from jax.experimental.pallas import tpu as pltpu

LANE = 128               # lane width  (last-dim granularity for padded outputs)
ROW_ALIGN = 16           # batch-tile row alignment (covers bf16 sublane packing)
ACT_VMEM_BUDGET = 12 * 1024 * 1024   # budget for double-buffered x/out tiles
MAX_TILE_B = 4096        # amortizes ~0.35us/step pipeline overhead


def _round_up(n: int, m: int) -> int:
    return ((n + m - 1) // m) * m


def _ceil_div(a: int, b: int) -> int:
    return -(-a // b)


# -----------------------------------------------------------------------------
# Fused kernel: the whole network (all layers) for one batch tile.
# -----------------------------------------------------------------------------
def fused_qg_kernel(*refs, num_layers: int, theta: float):
    # refs = (x_ref, w0_ref, b0_ref, w1_ref, b1_ref, ..., o_ref)
    x_ref = refs[0]
    wb_refs = refs[1:1 + 2 * num_layers]
    o_ref = refs[1 + 2 * num_layers]

    half_theta = jnp.float32(0.5 * theta)

    h = x_ref[...]                                    # (tile_b, din) bf16
    for l in range(num_layers):                       # static unroll
        w = wb_refs[2 * l][...]                       # (din_l, dout_l_p) bf16, resident
        b = wb_refs[2 * l + 1][...]                   # (1, dout_l_p)  f32
        # MXU matmul with bf16 operands, f32 accumulate.
        z = jnp.dot(h.astype(jnp.bfloat16), w,
                    preferred_element_type=jnp.float32) + b
        # Noncommutative (theta) deformation + tanh, all in f32 (tanh -> EUP).
        h = jnp.tanh(z + half_theta * (z * z))
    o_ref[...] = h.astype(o_ref.dtype)                # lane-dense 128-wide store


# -----------------------------------------------------------------------------
# Batch tiling: big tiles, >=2 grid steps when possible, VMEM-budgeted.
# -----------------------------------------------------------------------------
def _choose_batch_tiling(B, din_b, dout_b, requested=None):
    B_a = max(ROW_ALIGN, _round_up(B, ROW_ALIGN))
    # double-buffered x (bf16) + out (f32) tiles per row of tile
    per_row_bytes = 2 * (din_b * 2) + 2 * (dout_b * 4)
    cap = (ACT_VMEM_BUDGET // per_row_bytes) // ROW_ALIGN * ROW_ALIGN
    cap = max(ROW_ALIGN, min(MAX_TILE_B, cap))
    if requested is not None:
        tile_b = max(ROW_ALIGN, _round_up(min(int(requested), B_a), ROW_ALIGN))
        tile_b = min(tile_b, cap)
        n_steps = _ceil_div(B_a, tile_b)
    else:
        # >=2 steps whenever the batch allows it: v7x has 2 TensorCores that
        # split the "parallel" batch axis; a single-step grid idles one of them.
        min_steps = 2 if B_a >= 2 * ROW_ALIGN else 1
        n_steps = max(min_steps, _ceil_div(B_a, cap))
        tile_b = _round_up(_ceil_div(B_a, n_steps), ROW_ALIGN)
    B_p = tile_b * n_steps        # pad batch UP instead of shrinking the tile
    return tile_b, B_p, n_steps


# -----------------------------------------------------------------------------
# Wrapper: pad batch + output dims, run one fused pallas_call, slice back.
# -----------------------------------------------------------------------------
def quantum_gravity_network(x, params, theta: float = 0.1, *,
                            tile_b=None, use_pallas=None):
    """Forward pass of the whole network as ONE fused Pallas kernel."""
    B, din = x.shape
    num_layers = len(params)
    out_dims = [w.shape[1] for (w, _) in params]

    if use_pallas is None:
        # Tiny batches: a single grid step dominated by launch/DMA setup;
        # plain XLA fusion is faster there.
        use_pallas = B >= 64
    if not use_pallas:
        return quantum_gravity_network_ref(x, params, theta)

    # Output dims of every layer padded to 128 lanes (zero-padded weights/bias
    # keep the padded columns at tanh(0)=0 through every layer, so slicing the
    # result back is exact).  The INPUT feature dim is NOT padded: the x block
    # uses its true last dim and the first matmul runs with K=din.
    out_dims_p = [max(LANE, _round_up(d, LANE)) for d in out_dims]
    in_dims = [din] + out_dims_p[:-1]

    tile_b, B_p, n_steps = _choose_batch_tiling(B, din, out_dims_p[-1], tile_b)
    grid = (n_steps,)

    # Batch-only padding of x, shipped as bf16 (halves x DMA traffic; the
    # kernel would cast to bf16 before the matmul anyway).
    x_bf16 = x.astype(jnp.bfloat16)
    if B_p == B:
        x_p = x_bf16
    else:
        x_p = jnp.zeros((B_p, din), jnp.bfloat16).at[:B].set(x_bf16)

    # bf16 weights (MXU operands), f32 biases (added to the f32 accumulator).
    padded_params = []
    for l, (w, b) in enumerate(params):
        din_l, dout_l = w.shape
        w_p = jnp.zeros((in_dims[l], out_dims_p[l]), jnp.bfloat16)
        w_p = w_p.at[:din_l, :dout_l].set(w.astype(jnp.bfloat16))
        b_p = jnp.zeros((1, out_dims_p[l]), jnp.float32)
        b_p = b_p.at[0, :dout_l].set(b.astype(jnp.float32))
        padded_params += [w_p, b_p]

    # BlockSpecs: x / out tiled over the batch; every weight & bias is a single
    # full block with a constant index_map -> resident across all grid steps.
    in_specs = [pl.BlockSpec((tile_b, din), lambda i: (i, 0))]
    for l in range(num_layers):
        in_specs.append(
            pl.BlockSpec((in_dims[l], out_dims_p[l]), lambda i: (0, 0)))
        in_specs.append(
            pl.BlockSpec((1, out_dims_p[l]), lambda i: (0, 0)))
    out_spec = pl.BlockSpec((tile_b, out_dims_p[-1]), lambda i: (i, 0))

    kernel = functools.partial(
        fused_qg_kernel, num_layers=num_layers, theta=float(theta))

    out_p = pl.pallas_call(
        kernel,
        out_shape=jax.ShapeDtypeStruct((B_p, out_dims_p[-1]), jnp.float32),
        grid=grid,
        in_specs=in_specs,
        out_specs=out_spec,
        compiler_params=pltpu.CompilerParams(
            dimension_semantics=("parallel",),   # batch tiles split across TCs
            vmem_limit_bytes=32 * 1024 * 1024,   # headroom over v5e's default
        ),
    )(x_p, *padded_params)

    # Slice back to the logical output shape.
    return out_p[:B, :out_dims[-1]]


# -----------------------------------------------------------------------------
# Parameter init (matches the layer shapes of __init__) + pure-JAX reference.
# -----------------------------------------------------------------------------
def init_qg_network(key, input_dim, hidden_dims, output_dim):
    dims = [input_dim] + list(hidden_dims) + [output_dim]
    params = []
    for (din, dout) in zip(dims[:-1], dims[1:]):
        key, kw, kb = jax.random.split(key, 3)
        w = jax.random.normal(kw, (din, dout), dtype=jnp.float32) / jnp.sqrt(
            jnp.float32(din))
        b = 0.01 * jax.random.normal(kb, (dout,), dtype=jnp.float32)
        params.append((w, b))
    return params


def quantum_gravity_network_ref(x, params, theta=0.1):
    # Pure f32 reference of the assumed QuantumGravityLayer chain.
    h = x.astype(jnp.float32)
    for (w, b) in params:
        z = h @ w.astype(jnp.float32) + b.astype(jnp.float32)
        h = jnp.tanh(z + 0.5 * theta * z * z)
    return h


if __name__ == "__main__":
    key = jax.random.PRNGKey(0)
    k_in, k_params, k_in2 = jax.random.split(key, 3)

    # Small shapes consistent with the module: input_dim=32, hidden=[64, 64],
    # output_dim=16.
    input_dim = 32
    hidden_dims = [64, 64]
    output_dim = 16
    theta = 0.1
    params = init_qg_network(k_params, input_dim, hidden_dims, output_dim)

    # bf16 MXU operands -> compare against the f32 reference with a loosened
    # tolerance.
    ATOL = RTOL = 5e-2

    # 1) Tiny demo batch (forces the Pallas path; the auto-gate would pick XLA).
    batch = 8
    x = jax.random.normal(k_in, (batch, input_dim), dtype=jnp.float32)
    out = quantum_gravity_network(x, params, theta, use_pallas=True)
    out = jax.block_until_ready(out)
    ref = quantum_gravity_network_ref(x, params, theta)
    assert out.shape == (batch, output_dim)
    assert jnp.allclose(out, ref, atol=ATOL, rtol=RTOL), "mismatch (small batch)"

    # 2) Awkward batch size: exercises batch padding + multi-step parallel grid.
    batch2 = 528
    x2 = jax.random.normal(k_in2, (batch2, input_dim), dtype=jnp.float32)
    out2 = jax.block_until_ready(quantum_gravity_network(x2, params, theta))
    ref2 = quantum_gravity_network_ref(x2, params, theta)
    assert out2.shape == (batch2, output_dim)
    assert jnp.allclose(out2, ref2, atol=ATOL, rtol=RTOL), "mismatch (padded batch)"

    print("KERNEL_OK")
</pallas_src>

<mosaic_0001>
module attributes {stable_mosaic.version = 11 : i64} {
  func.func @fused_qg_kernel(%arg0: i32, %arg1: memref<16x32xbf16, #tpu.memory_space<vmem>>, %arg2: memref<32x128xbf16, #tpu.memory_space<vmem>>, %arg3: memref<1x128xf32, #tpu.memory_space<vmem>>, %arg4: memref<128x128xbf16, #tpu.memory_space<vmem>>, %arg5: memref<1x128xf32, #tpu.memory_space<vmem>>, %arg6: memref<128x128xbf16, #tpu.memory_space<vmem>>, %arg7: memref<1x128xf32, #tpu.memory_space<vmem>>, %arg8: memref<16x128xf32, #tpu.memory_space<vmem>>) attributes {dimension_semantics = [#tpu.dimension_semantics<parallel>], iteration_bounds = array<i64: 1>, scalar_prefetch = 0 : i64, scratch_operands = 0 : i64, tpu.core_type = #tpu.core_type<tc>, window_params = [{transform_indices = @transform_0, window_bounds = array<i64: 16, 32>}, {pipeline_mode = #tpu.pipeline_mode<synchronous>, transform_indices = @transform_1, window_bounds = array<i64: 32, 128>}, {pipeline_mode = #tpu.pipeline_mode<synchronous>, transform_indices = @transform_2, window_bounds = array<i64: 1, 128>}, {pipeline_mode = #tpu.pipeline_mode<synchronous>, transform_indices = @transform_3, window_bounds = array<i64: 128, 128>}, {pipeline_mode = #tpu.pipeline_mode<synchronous>, transform_indices = @transform_4, window_bounds = array<i64: 1, 128>}, {pipeline_mode = #tpu.pipeline_mode<synchronous>, transform_indices = @transform_5, window_bounds = array<i64: 128, 128>}, {pipeline_mode = #tpu.pipeline_mode<synchronous>, transform_indices = @transform_6, window_bounds = array<i64: 1, 128>}, {transform_indices = @transform_7, window_bounds = array<i64: 16, 128>}]} {
    %c0 = arith.constant 0 : index
    %c0_0 = arith.constant 0 : index
    %0 = vector.load %arg1[%c0, %c0_0] : memref<16x32xbf16, #tpu.memory_space<vmem>>, vector<16x32xbf16>
    %c0_1 = arith.constant 0 : index
    %c0_2 = arith.constant 0 : index
    %1 = vector.load %arg2[%c0_1, %c0_2] : memref<32x128xbf16, #tpu.memory_space<vmem>>, vector<32x128xbf16>
    %c0_3 = arith.constant 0 : index
    %c0_4 = arith.constant 0 : index
    %2 = vector.load %arg3[%c0_3, %c0_4] : memref<1x128xf32, #tpu.memory_space<vmem>>, vector<1x128xf32>
    %cst = arith.constant dense<0.000000e+00> : vector<16x128xf32>
    %3 = tpu.matmul %0, %1, %cst {dimension_numbers = #tpu.dot_dimension_numbers<[1], [0], [0], [1], [0, 0, 1, 1], [], []>} : vector<16x32xbf16>, vector<32x128xbf16>, vector<16x128xf32> -> vector<16x128xf32>
    %4 = vector.broadcast %2 : vector<1x128xf32> to vector<16x128xf32>
    %5 = arith.addf %3, %4 : vector<16x128xf32>
    %6 = arith.mulf %5, %5 : vector<16x128xf32>
    %cst_5 = arith.constant 5.000000e-02 : f32
    %7 = vector.broadcast %cst_5 : f32 to vector<16x128xf32>
    %8 = arith.mulf %7, %6 : vector<16x128xf32>
    %9 = arith.addf %5, %8 : vector<16x128xf32>
    %10 = math.tanh %9 : vector<16x128xf32>
    %c0_6 = arith.constant 0 : index
    %c0_7 = arith.constant 0 : index
    %11 = vector.load %arg4[%c0_6, %c0_7] : memref<128x128xbf16, #tpu.memory_space<vmem>>, vector<128x128xbf16>
    %c0_8 = arith.constant 0 : index
    %c0_9 = arith.constant 0 : index
    %12 = vector.load %arg5[%c0_8, %c0_9] : memref<1x128xf32, #tpu.memory_space<vmem>>, vector<1x128xf32>
    %13 = arith.truncf %10 : vector<16x128xf32> to vector<16x128xbf16>
    %cst_10 = arith.constant dense<0.000000e+00> : vector<16x128xf32>
    %14 = tpu.matmul %13, %11, %cst_10 {dimension_numbers = #tpu.dot_dimension_numbers<[1], [0], [0], [1], [0, 0, 1, 1], [], []>} : vector<16x128xbf16>, vector<128x128xbf16>, vector<16x128xf32> -> vector<16x128xf32>
    %15 = vector.broadcast %12 : vector<1x128xf32> to vector<16x128xf32>
    %16 = arith.addf %14, %15 : vector<16x128xf32>
    %17 = arith.mulf %16, %16 : vector<16x128xf32>
    %cst_11 = arith.constant 5.000000e-02 : f32
    %18 = vector.broadcast %cst_11 : f32 to vector<16x128xf32>
    %19 = arith.mulf %18, %17 : vector<16x128xf32>
    %20 = arith.addf %16, %19 : vector<16x128xf32>
    %21 = math.tanh %20 : vector<16x128xf32>
    %c0_12 = arith.constant 0 : index
    %c0_13 = arith.constant 0 : index
    %22 = vector.load %arg6[%c0_12, %c0_13] : memref<128x128xbf16, #tpu.memory_space<vmem>>, vector<128x128xbf16>
    %c0_14 = arith.constant 0 : index
    %c0_15 = arith.constant 0 : index
    %23 = vector.load %arg7[%c0_14, %c0_15] : memref<1x128xf32, #tpu.memory_space<vmem>>, vector<1x128xf32>
    %24 = arith.truncf %21 : vector<16x128xf32> to vector<16x128xbf16>
    %cst_16 = arith.constant dense<0.000000e+00> : vector<16x128xf32>
    %25 = tpu.matmul %24, %22, %cst_16 {dimension_numbers = #tpu.dot_dimension_numbers<[1], [0], [0], [1], [0, 0, 1, 1], [], []>} : vector<16x128xbf16>, vector<128x128xbf16>, vector<16x128xf32> -> vector<16x128xf32>
    %26 = vector.broadcast %23 : vector<1x128xf32> to vector<16x128xf32>
    %27 = arith.addf %25, %26 : vector<16x128xf32>
    %28 = arith.mulf %27, %27 : vector<16x128xf32>
    %cst_17 = arith.constant 5.000000e-02 : f32
    %29 = vector.broadcast %cst_17 : f32 to vector<16x128xf32>
    %30 = arith.mulf %29, %28 : vector<16x128xf32>
    %31 = arith.addf %27, %30 : vector<16x128xf32>
    %32 = math.tanh %31 : vector<16x128xf32>
    %c0_18 = arith.constant 0 : index
    %c0_19 = arith.constant 0 : index
    %33 = vector.load %arg8[%c0_18, %c0_19] : memref<16x128xf32, #tpu.memory_space<vmem>>, vector<16x128xf32>
    tpu.vector_store %arg8[%c0_18, %c0_19], %32 {strides = array<i32>} : memref<16x128xf32, #tpu.memory_space<vmem>>, vector<16x128xf32>,
    return
  }
  func.func @transform_0(%arg0: i32) -> (i32, i32) {
    %c0_i32 = arith.constant 0 : i32
    %c0_i32_0 = arith.constant 0 : i32
    return %arg0, %c0_i32 : i32, i32
  }
  func.func @transform_1(%arg0: i32) -> (i32, i32) {
    %c0_i32 = arith.constant 0 : i32
    %c0_i32_0 = arith.constant 0 : i32
    %c0_i32_1 = arith.constant 0 : i32
    return %c0_i32, %c0_i32_0 : i32, i32
  }
  func.func @transform_2(%arg0: i32) -> (i32, i32) {
    %c0_i32 = arith.constant 0 : i32
    %c0_i32_0 = arith.constant 0 : i32
    %c0_i32_1 = arith.constant 0 : i32
    return %c0_i32, %c0_i32_0 : i32, i32
  }
  func.func @transform_3(%arg0: i32) -> (i32, i32) {
    %c0_i32 = arith.constant 0 : i32
    %c0_i32_0 = arith.constant 0 : i32
    %c0_i32_1 = arith.constant 0 : i32
    return %c0_i32, %c0_i32_0 : i32, i32
  }
  func.func @transform_4(%arg0: i32) -> (i32, i32) {
    %c0_i32 = arith.constant 0 : i32
    %c0_i32_0 = arith.constant 0 : i32
    %c0_i32_1 = arith.constant 0 : i32
    return %c0_i32, %c0_i32_0 : i32, i32
  }
  func.func @transform_5(%arg0: i32) -> (i32, i32) {
    %c0_i32 = arith.constant 0 : i32
    %c0_i32_0 = arith.constant 0 : i32
    %c0_i32_1 = arith.constant 0 : i32
    return %c0_i32, %c0_i32_0 : i32, i32
  }
  func.func @transform_6(%arg0: i32) -> (i32, i32) {
    %c0_i32 = arith.constant 0 : i32
    %c0_i32_0 = arith.constant 0 : i32
    %c0_i32_1 = arith.constant 0 : i32
    return %c0_i32, %c0_i32_0 : i32, i32
  }
  func.func @transform_7(%arg0: i32) -> (i32, i32) {
    %c0_i32 = arith.constant 0 : i32
    %c0_i32_0 = arith.constant 0 : i32
    return %arg0, %c0_i32 : i32, i32
  }
}

</mosaic_0001>

<llo_original>
// kernel: tpu_custom_call.1
$region0: #{tpu_custom_call.1}
  #allocation0 [shape = 'u32[]', space=smem, size = 0x4, offset = 0x4, fixed_abs, tag = 'smem constant byte address 0x4 - core index']
  #allocation1 [shape = 'u32[72,128]{1,0:T(1,128)}', space=vmem, size = 0x9000, scoped, tag = 'internal scratch']
  %s0 = inlined_call_operand.hbm [shape: bf16[16,32], index: 0, kind: input, shape index: {}]
  %s1 = inlined_call_operand.hbm [shape: bf16[32,128], index: 1, kind: input, shape index: {}]
  %s2 = inlined_call_operand.vmem [shape: f32[1,128], index: 2, kind: input, shape index: {}]
  %s3 = inlined_call_operand.hbm [shape: bf16[128,128], index: 3, kind: input, shape index: {}]
  %s4 = inlined_call_operand.vmem [shape: f32[1,128], index: 4, kind: input, shape index: {}]
  %s5 = inlined_call_operand.hbm [shape: bf16[128,128], index: 5, kind: input, shape index: {}]
  %s6 = inlined_call_operand.vmem [shape: f32[1,128], index: 6, kind: input, shape index: {}]
  %s7 = inlined_call_operand.hbm [shape: f32[16,128], index: 7, kind: output, shape index: {}]
  %s8 = sld [smem:[#allocation0]]
  $region54: #{tpu_custom_call.1} parent=0
    _
  %s10 = ssub.s32 1, %s8
  %s11 = scalar_select 0, %s10, %s8
  $region1: #{tpu_custom_call.1} parent=0
    #allocation2 [shape = 'u8[4096]{0}', space=vmem, size = 0x1000, scoped, tag = 'input window, operand 0, single buffered']
    #allocation3 [shape = 's32[1]{0}', space=sflag, size = 0x4, scoped, tag = 'scoped memory for tpu_custom_call.1']
    #allocation4 [shape = 's32[1]{0}', space=sflag, size = 0x4, scoped, tag = 'scoped memory for tpu_custom_call.1']
    #allocation5 [shape = 'u8[8192]{0}', space=vmem, size = 0x2000, scoped, tag = 'input window, operand 1, single buffered']
    #allocation6 [shape = 's32[1]{0}', space=sflag, size = 0x4, scoped, tag = 'scoped memory for tpu_custom_call.1']
    #allocation7 [shape = 'u8[32768]{0}', space=vmem, size = 0x8000, scoped, tag = 'input window, operand 3, single buffered']
    #allocation8 [shape = 'u8[32768]{0}', space=vmem, size = 0x8000, scoped, tag = 'input window, operand 5, single buffered']
    #allocation9 [shape = 's32[1]{0}', space=sflag, size = 0x4, scoped, tag = 'scoped memory for tpu_custom_call.1']
    #allocation10 [shape = 'u8[8192]{0}', space=vmem, size = 0x2000, scoped, tag = 'output window, operand 0, single buffered']
    %12 = vsyncpa [#allocation3], 0
    %13 = vsyncpa [#allocation6], 0
    %14 = vsyncpa [#allocation9], 0
    %15 = vsyncpa [#allocation4], 0
    // Predicated region
    $region2: #{tpu_custom_call.1} parent=1 // pred_check
      _
    $region3: #{tpu_custom_call.1} parent=1 // pred_check_branch
      %17 = sbr.rel (0) target = $region5
    $region4: #{tpu_custom_call.1} parent=1 // pred_region
      %19 = vsyncadd [#allocation3], 0
      %s20 = sshll.u32 %s0, 4
      %s21 = int_to_ptr.hbm [resolvable:$true] %s20
      %s22 = sshll.u32 [#allocation2], 4
      %s23 = int_to_ptr.vmem [resolvable:$true] %s22
      %28 = dma.hbm_to_vmem [thread:$0]  %s21, 128, %s23, [#allocation3], 64, 64, 4
    $region5: #{tpu_custom_call.1} parent=1 // pred_fallthru
      _
    // Predicated region
    $region6: #{tpu_custom_call.1} parent=1 // pred_check
      _
    $region7: #{tpu_custom_call.1} parent=1 // pred_check_branch
      %30 = sbr.rel (0) target = $region9
    $region8: #{tpu_custom_call.1} parent=1 // pred_region
      %32 = vsyncadd [#allocation6], 0
      %s33 = sshll.u32 %s1, 4
      %s34 = int_to_ptr.hbm [resolvable:$true] %s33
      %s35 = sshll.u32 [#allocation5], 4
      %s36 = int_to_ptr.vmem [resolvable:$true] %s35
      %41 = dma.hbm_to_vmem [thread:$0]  %s34, 256, %s36, [#allocation6], 64, 64, 4
    $region9: #{tpu_custom_call.1} parent=1 // pred_fallthru
      _
    // Predicated region
    $region10: #{tpu_custom_call.1} parent=1 // pred_check
      _
    $region11: #{tpu_custom_call.1} parent=1 // pred_check_branch
      %43 = sbr.rel (0) target = $region13
    $region12: #{tpu_custom_call.1} parent=1 // pred_region
      _
    $region13: #{tpu_custom_call.1} parent=1 // pred_fallthru
      _
    // Predicated region
    $region14: #{tpu_custom_call.1} parent=1 // pred_check
      _
    $region15: #{tpu_custom_call.1} parent=1 // pred_check_branch
      %45 = sbr.rel (0) target = $region17
    $region16: #{tpu_custom_call.1} parent=1 // pred_region
      %47 = vsyncadd [#allocation6], 0
      %s48 = sshll.u32 %s3, 4
      %s49 = int_to_ptr.hbm [resolvable:$true] %s48
      %s50 = sshll.u32 [#allocation7], 4
      %s51 = int_to_ptr.vmem [resolvable:$true] %s50
      %56 = dma.hbm_to_vmem [thread:$0]  %s49, 1024, %s51, [#allocation6], 64, 64, 4
    $region17: #{tpu_custom_call.1} parent=1 // pred_fallthru
      _
    // Predicated region
    $region18: #{tpu_custom_call.1} parent=1 // pred_check
      _
    $region19: #{tpu_custom_call.1} parent=1 // pred_check_branch
      %58 = sbr.rel (0) target = $region21
    $region20: #{tpu_custom_call.1} parent=1 // pred_region
      _
    $region21: #{tpu_custom_call.1} parent=1 // pred_fallthru
      _
    // Predicated region
    $region22: #{tpu_custom_call.1} parent=1 // pred_check
      _
    $region23: #{tpu_custom_call.1} parent=1 // pred_check_branch
      %60 = sbr.rel (0) target = $region25
    $region24: #{tpu_custom_call.1} parent=1 // pred_region
      %62 = vsyncadd [#allocation9], 0
      %s63 = sshll.u32 %s5, 4
      %s64 = int_to_ptr.hbm [resolvable:$true] %s63
      %s65 = sshll.u32 [#allocation8], 4
      %s66 = int_to_ptr.vmem [resolvable:$true] %s65
      %71 = dma.hbm_to_vmem [thread:$0]  %s64, 1024, %s66, [#allocation9], 64, 64, 4
    $region25: #{tpu_custom_call.1} parent=1 // pred_fallthru
      _
    // Predicated region
    $region26: #{tpu_custom_call.1} parent=1 // pred_check
      _
    $region27: #{tpu_custom_call.1} parent=1 // pred_check_branch
      %73 = sbr.rel (0) target = $region29
    $region28: #{tpu_custom_call.1} parent=1 // pred_region
      _
    $region29: #{tpu_custom_call.1} parent=1 // pred_fallthru
      _
    // Predicated region
    $region30: #{tpu_custom_call.1} parent=1 // pred_check
      _
    $region31: #{tpu_custom_call.1} parent=1 // pred_check_branch
      %75 = sbr.rel (0) target = $region33
    $region32: #{tpu_custom_call.1} parent=1 // pred_region
      %77 = dma.done [#allocation3], 128
    $region33: #{tpu_custom_call.1} parent=1 // pred_fallthru
      _
    // Predicated region
    $region34: #{tpu_custom_call.1} parent=1 // pred_check
      _
    $region35: #{tpu_custom_call.1} parent=1 // pred_check_branch
      %79 = sbr.rel (0) target = $region37
    $region36: #{tpu_custom_call.1} parent=1 // pred_region
      %81 = dma.done [#allocation6], 256
    $region37: #{tpu_custom_call.1} parent=1 // pred_fallthru
      _
    // Predicated region
    $region38: #{tpu_custom_call.1} parent=1 // pred_check
      _
    $region39: #{tpu_custom_call.1} parent=1 // pred_check_branch
      %83 = sbr.rel (0) target = $region41
    $region40: #{tpu_custom_call.1} parent=1 // pred_region
      %85 = dma.done [#allocation6], 1024
    $region41: #{tpu_custom_call.1} parent=1 // pred_fallthru
      _
    // Predicated region
    $region42: #{tpu_custom_call.1} parent=1 // pred_check
      _
    $region43: #{tpu_custom_call.1} parent=1 // pred_check_branch
      %87 = sbr.rel (0) target = $region45
    $region44: #{tpu_custom_call.1} parent=1 // pred_region
      %89 = dma.done [#allocation9], 1024
    $region45: #{tpu_custom_call.1} parent=1 // pred_fallthru
      _
    %v91 = vld [vmem:[#allocation2] sm:$0xf]
    %v92 = vld [vmem:[#allocation2 + $0x4] sm:$0xf]
    %v93 = vld [vmem:[#allocation5] sm:$0xf]
    %v94 = vld [vmem:[#allocation5 + $0x4] sm:$0xf]
    %v95 = vld [vmem:[#allocation5 + $0x8] sm:$0xf]
    %v96 = vld [vmem:[#allocation5 + $0xc] sm:$0xf]
    %v97 = vld [vmem:[%s2] sm:$0x1]
    %v99 = vperm.slane %v97, 0
    %v103 = vunpack.c.l.b16 %v91
    %v104 = vunpack.c.l.b16 %v92
    %v105 = vpack.c.b16 %v104, %v103
    %v110 = vunpack.c.l.b16 %v93
    %v111 = vunpack.c.l.b16 %v94
    %v112 = vunpack.c.l.b16 %v95
    %v113 = vunpack.c.l.b16 %v96
    %v114 = vpack.c.b16 %v111, %v110
    %v115 = vpack.c.b16 %v113, %v112
    %vm118 = vcmask 261120
    %v120 = vsel %vm118, %v105, 0
    %122 = vmatpush.bf16.msra.mxu0 0
    %123 = vmatpush.bf16.msra.mxu0 0
    %124 = vmatpush.bf16.msra.mxu0 0
    %125 = vmatpush.bf16.msra.mxu0 0
    %126 = vmatpush.bf16.msra.mxu0 0
    %127 = vmatpush.bf16.msra.mxu0 0
    %128 = vmatpush.bf16.msra.mxu0 %v115
    %129 = vmatpush.bf16.msra.mxu0 %v114
    %130 = vmatmul.bf16.gmra.mxu0 %v120
    %v131 = vpop.f32.mrf.mxu0
    %v132 = vadd.f32 %v99, %v131
    %v133 = vpop.f32.mrf.mxu0
    %v134 = vadd.f32 %v99, %v133
    %135 = vdwg.mxu0
    %v136 = vmul.f32 %v132, %v132
    %v137 = vmul.f32 %v134, %v134
    %v138 = vmul.f32 %v136, 0.05
    %v139 = vmul.f32 %v137, 0.05
    %v140 = vadd.f32 %v132, %v138
    %v141 = vadd.f32 %v134, %v139
    %v142 = vtanh.pop %v140
    %v143 = vtanh.pop %v141
    %v144 = vld [vmem:[#allocation7] sm:$0xf]
    %v145 = vld [vmem:[#allocation7 + $0x4] sm:$0xf]
    %v146 = vld [vmem:[#allocation7 + $0x8] sm:$0xf]
    %v147 = vld [vmem:[#allocation7 + $0xc] sm:$0xf]
    %v148 = vld [vmem:[#allocation7 + $0x10] sm:$0xf]
    %v149 = vld [vmem:[#allocation7 + $0x14] sm:$0xf]
    %v150 = vld [vmem:[#allocation7 + $0x18] sm:$0xf]
    %v151 = vld [vmem:[#allocation7 + $0x1c] sm:$0xf]
    %v152 = vld [vmem:[#allocation7 + $0x20] sm:$0xf]
    %v153 = vld [vmem:[#allocation7 + $0x24] sm:$0xf]
    %v154 = vld [vmem:[#allocation7 + $0x28] sm:$0xf]
    %v155 = vld [vmem:[#allocation7 + $0x2c] sm:$0xf]
    %v156 = vld [vmem:[#allocation7 + $0x30] sm:$0xf]
    %v157 = vld [vmem:[#allocation7 + $0x34] sm:$0xf]
    %v158 = vld [vmem:[#allocation7 + $0x38] sm:$0xf]
    %v159 = vld [vmem:[#allocation7 + $0x3c] sm:$0xf]
    %v160 = vld [vmem:[%s4] sm:$0x1]
    %v161 = vpack.c.bf16 %v143, %v142
    %v163 = vperm.slane %v160, 0
    %v181 = vunpack.c.l.b16 %v144
    %v182 = vunpack.c.l.b16 %v145
    %v183 = vunpack.c.l.b16 %v146
    %v184 = vunpack.c.l.b16 %v147
    %v185 = vunpack.c.l.b16 %v148
    %v186 = vunpack.c.l.b16 %v149
    %v187 = vunpack.c.l.b16 %v150
    %v188 = vunpack.c.l.b16 %v151
    %v189 = vunpack.c.l.b16 %v152
    %v190 = vunpack.c.l.b16 %v153
    %v191 = vunpack.c.l.b16 %v154
    %v192 = vunpack.c.l.b16 %v155
    %v193 = vunpack.c.l.b16 %v156
    %v194 = vunpack.c.l.b16 %v157
    %v195 = vunpack.c.l.b16 %v158
    %v196 = vunpack.c.l.b16 %v159
    %v197 = vpack.c.b16 %v182, %v181
    %v198 = vpack.c.b16 %v184, %v183
    %v199 = vpack.c.b16 %v186, %v185
    %v200 = vpack.c.b16 %v188, %v187
    %v201 = vpack.c.b16 %v190, %v189
    %v202 = vpack.c.b16 %v192, %v191
    %v203 = vpack.c.b16 %v194, %v193
    %v204 = vpack.c.b16 %v196, %v195
    %213 = vmatpush.bf16.msra.mxu0 %v204
    %214 = vmatpush.bf16.msra.mxu0 %v203
    %215 = vmatpush.bf16.msra.mxu0 %v202
    %216 = vmatpush.bf16.msra.mxu0 %v201
    %217 = vmatpush.bf16.msra.mxu0 %v200
    %218 = vmatpush.bf16.msra.mxu0 %v199
    %219 = vmatpush.bf16.msra.mxu0 %v198
    %220 = vmatpush.bf16.msra.mxu0 %v197
    %221 = vmatmul.bf16.gmra.mxu0 %v161
    %v222 = vpop.f32.mrf.mxu0
    %v223 = vadd.f32 %v163, %v222
    %v224 = vpop.f32.mrf.mxu0
    %v225 = vadd.f32 %v163, %v224
    %226 = vdwg.mxu0
    %v227 = vmul.f32 %v223, %v223
    %v228 = vmul.f32 %v225, %v225
    %v229 = vmul.f32 %v227, 0.05
    %v230 = vmul.f32 %v228, 0.05
    %v231 = vadd.f32 %v223, %v229
    %v232 = vadd.f32 %v225, %v230
    %v233 = vtanh.pop %v231
    %v234 = vtanh.pop %v232
    %v235 = vld [vmem:[#allocation8] sm:$0xf]
    %v236 = vld [vmem:[#allocation8 + $0x4] sm:$0xf]
    %v237 = vld [vmem:[#allocation8 + $0x8] sm:$0xf]
    %v238 = vld [vmem:[#allocation8 + $0xc] sm:$0xf]
    %v239 = vld [vmem:[#allocation8 + $0x10] sm:$0xf]
    %v240 = vld [vmem:[#allocation8 + $0x14] sm:$0xf]
    %v241 = vld [vmem:[#allocation8 + $0x18] sm:$0xf]
    %v242 = vld [vmem:[#allocation8 + $0x1c] sm:$0xf]
    %v243 = vld [vmem:[#allocation8 + $0x20] sm:$0xf]
    %v244 = vld [vmem:[#allocation8 + $0x24] sm:$0xf]
    %v245 = vld [vmem:[#allocation8 + $0x28] sm:$0xf]
    %v246 = vld [vmem:[#allocation8 + $0x2c] sm:$0xf]
    %v247 = vld [vmem:[#allocation8 + $0x30] sm:$0xf]
    %v248 = vld [vmem:[#allocation8 + $0x34] sm:$0xf]
    %v249 = vld [vmem:[#allocation8 + $0x38] sm:$0xf]
    %v250 = vld [vmem:[#allocation8 + $0x3c] sm:$0xf]
    %v251 = vld [vmem:[%s6] sm:$0x1]
    %v252 = vpack.c.bf16 %v234, %v233
    %v254 = vperm.slane %v251, 0
    %v272 = vunpack.c.l.b16 %v235
    %v273 = vunpack.c.l.b16 %v236
    %v274 = vunpack.c.l.b16 %v237
    %v275 = vunpack.c.l.b16 %v238
    %v276 = vunpack.c.l.b16 %v239
    %v277 = vunpack.c.l.b16 %v240
    %v278 = vunpack.c.l.b16 %v241
    %v279 = vunpack.c.l.b16 %v242
    %v280 = vunpack.c.l.b16 %v243
    %v281 = vunpack.c.l.b16 %v244
    %v282 = vunpack.c.l.b16 %v245
    %v283 = vunpack.c.l.b16 %v246
    %v284 = vunpack.c.l.b16 %v247
    %v285 = vunpack.c.l.b16 %v248
    %v286 = vunpack.c.l.b16 %v249
    %v287 = vunpack.c.l.b16 %v250
    %v288 = vpack.c.b16 %v273, %v272
    %v289 = vpack.c.b16 %v275, %v274
    %v290 = vpack.c.b16 %v277, %v276
    %v291 = vpack.c.b16 %v279, %v278
    %v292 = vpack.c.b16 %v281, %v280
    %v293 = vpack.c.b16 %v283, %v282
    %v294 = vpack.c.b16 %v285, %v284
    %v295 = vpack.c.b16 %v287, %v286
    %304 = vmatpush.bf16.msra.mxu0 %v295
    %305 = vmatpush.bf16.msra.mxu0 %v294
    %306 = vmatpush.bf16.msra.mxu0 %v293
    %307 = vmatpush.bf16.msra.mxu0 %v292
    %308 = vmatpush.bf16.msra.mxu0 %v291
    %309 = vmatpush.bf16.msra.mxu0 %v290
    %310 = vmatpush.bf16.msra.mxu0 %v289
    %311 = vmatpush.bf16.msra.mxu0 %v288
    %312 = vmatmul.bf16.gmra.mxu0 %v252
    %v313 = vpop.f32.mrf.mxu0
    %v314 = vadd.f32 %v254, %v313
    %v315 = vpop.f32.mrf.mxu0
    %v316 = vadd.f32 %v254, %v315
    %317 = vdwg.mxu0
    %v318 = vmul.f32 %v314, %v314
    %v319 = vmul.f32 %v316, %v316
    %v320 = vmul.f32 %v318, 0.05
    %v321 = vmul.f32 %v319, 0.05
    %v322 = vadd.f32 %v314, %v320
    %v323 = vadd.f32 %v316, %v321
    %v324 = vtanh.pop %v322
    %v325 = vtanh.pop %v323
    %326 = vst [vmem:[#allocation10] sm:$0xff] %v324
    %327 = vst [vmem:[#allocation10 + $0x8] sm:$0xff] %v325
    // Predicated region
    $region46: #{tpu_custom_call.1} parent=1 // pred_check
      _
    $region47: #{tpu_custom_call.1} parent=1 // pred_check_branch
      %329 = sbr.rel (0) target = $region49
    $region48: #{tpu_custom_call.1} parent=1 // pred_region
      %331 = vsyncadd [#allocation4], 0
      %s332 = sshll.u32 [#allocation10], 4
      %s333 = int_to_ptr.vmem [resolvable:$true] %s332
      %s334 = sshll.u32 %s7, 4
      %s335 = int_to_ptr.hbm [resolvable:$true] %s334
      %340 = dma.vmem_to_hbm [thread:$0]  %s333, 256, %s335, [#allocation4], 128, 128, 8
    $region49: #{tpu_custom_call.1} parent=1 // pred_fallthru
      _
    // Predicated region
    $region50: #{tpu_custom_call.1} parent=1 // pred_check
      _
    $region51: #{tpu_custom_call.1} parent=1 // pred_check_branch
      %342 = sbr.rel (0) target = $region53
    $region52: #{tpu_custom_call.1} parent=1 // pred_region
      %344 = dma.done [#allocation4], 256
    $region53: #{tpu_custom_call.1} parent=1 // pred_fallthru
      _
    %345 = vsyncpa [#allocation3], 1
    %346 = vsyncpa [#allocation6], 1
    %347 = vsyncpa [#allocation9], 1
    %348 = vsyncpa [#allocation4], 1

</llo_original>
